<compile_context>
chip_gen: v7x
topology: tpu7x:2x2x1
jax: 0.10.0
libtpu: 0.0.40
codegen_flags: <defaults>
</compile_context>

<pallas_src>
import jax
import jax.numpy as jnp
from jax.experimental import pallas as pl
from jax.experimental.pallas import tpu as pltpu


# --------------------------------------------------------------------------- #
# Kernel 1: out = clamp(softplus(x @ W^T), 0.001, 1000)                        #
#   - rows of all batches collapsed into one grid axis (tiles of <=512 rows)   #
#   - output padded to a multiple of 128 lanes (sliced back in the wrapper)    #
# --------------------------------------------------------------------------- #
def _linear_softplus_kernel(x_ref, wt_ref, out_ref):
    # x_ref: (TM, F); wt_ref: (F, Op); out_ref: (TM, Op)
    y = jnp.dot(x_ref[...], wt_ref[...], preferred_element_type=jnp.float32)
    # numerically stable softplus: max(y,0) + log1p(exp(-|y|))
    sp = jnp.maximum(y, 0.0) + jnp.log1p(jnp.exp(-jnp.abs(y)))
    out_ref[...] = jnp.clip(sp, 0.001, 1000.0)


def _row_tile(M):
    if M >= 512:
        return 512
    return 8 * pl.cdiv(M, 8)


def linear_softplus(x, w):
    # x: (B, N, F); w: (O, F)  [same layout as torch.nn.Linear.weight]
    B, N, F = x.shape
    O = w.shape[0]
    M = B * N
    TM = _row_tile(M)
    Mp = TM * pl.cdiv(M, TM)
    Op = 128 * pl.cdiv(O, 128)                       # lane-dense output width

    x2 = jnp.asarray(x, jnp.float32).reshape(M, F)
    if Mp != M:
        x2 = jnp.pad(x2, ((0, Mp - M), (0, 0)))
    wt = jnp.zeros((F, Op), jnp.float32).at[:, :O].set(jnp.asarray(w, jnp.float32).T)

    out = pl.pallas_call(
        _linear_softplus_kernel,
        out_shape=jax.ShapeDtypeStruct((Mp, Op), jnp.float32),
        grid_spec=pltpu.PrefetchScalarGridSpec(
            num_scalar_prefetch=0,
            grid=(Mp // TM,),
            in_specs=[
                pl.BlockSpec((TM, F), lambda i: (i, 0)),
                pl.BlockSpec((F, Op), lambda i: (0, 0)),   # weight stays resident
            ],
            out_specs=pl.BlockSpec((TM, Op), lambda i: (i, 0)),
        ),
        compiler_params=pltpu.CompilerParams(dimension_semantics=("parallel",)),
    )(x2, wt)
    return out[:M, :O].reshape(B, N, O)


# --------------------------------------------------------------------------- #
# Kernel 2: per-(batch, particle) reconstruction loss, tiled over (N, N)       #
#   logits_tile = SK[rows] @ S[cols]^T          (SK = S @ mu_tilde, hoisted)   #
#   w           = where(adj > 0, pw[b], 1)      (per-batch scalar from SMEM)   #
#   edge_mask   = mask_row * mask_col           (outer product built in-kernel)#
#   out[b, p]   = sum_tiles sum( w * BCEWithLogits(logits, adj) * edge_mask )  #
# --------------------------------------------------------------------------- #
def _rec_loss_kernel(sk_ref, s_ref, adj_ref, mrow_ref, mcol_ref, pw_ref,
                     out_ref, acc_ref):
    b = pl.program_id(0)
    ti = pl.program_id(2)
    tj = pl.program_id(3)

    @pl.when(jnp.logical_and(ti == 0, tj == 0))
    def _init():
        acc_ref[0, 0] = jnp.float32(0.0)

    sk = sk_ref[0, 0]                                               # (TI, C)
    s = s_ref[0, 0]                                                 # (TJ, C)
    # SK_rows @ S_cols^T without materializing a transpose.
    logits = jax.lax.dot_general(
        sk, s, dimension_numbers=(((1,), (1,)), ((), ())),
        preferred_element_type=jnp.float32)                         # (TI, TJ)

    z = adj_ref[0]                                                  # (TI, TJ)
    pw = pw_ref[b]                                                  # scalar (SMEM)
    # torch BCEWithLogitsLoss(weight=w): w multiplies the whole per-element loss.
    wm = jnp.where(z > 0.0, pw, 1.0) * (mrow_ref[0] * mcol_ref[0])  # (TI, TJ)
    bce = (jnp.maximum(logits, 0.0) - logits * z
           + jnp.log1p(jnp.exp(-jnp.abs(logits))))
    acc_ref[0, 0] += jnp.sum(wm * bce)

    @pl.when(jnp.logical_and(ti == pl.num_programs(2) - 1,
                             tj == pl.num_programs(3) - 1))
    def _finalize():
        out_ref[0, 0] = acc_ref[0, 0]


def _pick_tile(N):
    for t in (1024, 512, 256, 128):
        if N % t == 0:
            return t
    return N   # small / irregular N: one full-plane block


def rec_loss_sum(SK, S, adj, node_mask, pw_scalar):
    # SK, S: (P, B, N, C); adj: (B, N, N); node_mask: (B, N); pw_scalar: (B,)
    P, B, N, C = S.shape
    T = _pick_tile(N)
    nt = N // T
    mask_row = node_mask[:, :, None]                                # (B, N, 1)
    mask_col = node_mask[:, None, :]                                # (B, 1, N)
    return pl.pallas_call(
        _rec_loss_kernel,
        out_shape=jax.ShapeDtypeStruct((B, P), jnp.float32),
        grid_spec=pltpu.PrefetchScalarGridSpec(
            num_scalar_prefetch=0,
            grid=(B, P, nt, nt),
            in_specs=[
                pl.BlockSpec((1, 1, T, C), lambda b, p, i, j: (p, b, i, 0)),
                pl.BlockSpec((1, 1, T, C), lambda b, p, i, j: (p, b, j, 0)),
                pl.BlockSpec((1, T, T), lambda b, p, i, j: (b, i, j)),
                pl.BlockSpec((1, T, 1), lambda b, p, i, j: (b, i, 0)),
                pl.BlockSpec((1, 1, T), lambda b, p, i, j: (b, 0, j)),
                pl.BlockSpec(memory_space=pltpu.MemorySpace.SMEM),  # pw (B,)
            ],
            out_specs=pl.BlockSpec((1, 1), lambda b, p, i, j: (b, p),
                                   memory_space=pltpu.MemorySpace.SMEM),
            scratch_shapes=[pltpu.SMEM((1, 1), jnp.float32)],
        ),
        compiler_params=pltpu.CompilerParams(
            dimension_semantics=("parallel", "parallel", "arbitrary", "arbitrary")),
    )(SK, S, adj, mask_row, mask_col, pw_scalar)


# --------------------------------------------------------------------------- #
# Full BNPool forward (default path: return_coarsened_graph is falsy)          #
# --------------------------------------------------------------------------- #
# TODO(synk): return_coarsened_graph branch (coarsened adj / pooled x) is not
# implemented; the default forward path returning (S, loss_d) is reproduced.
# TODO(synk): only the balance_links-style pos_weight (per-batch scalar gated
# by adj>0, or None) is supported; a dense (B,N,N) pos_weight path would need a
# second kernel variant streaming the full weight plane.
def bnpool_forward(params, node_embs, adj, node_mask, pos_weight, sample_key,
                   n_particles=1, alpha_DP=10.0, eta=1.0, rescale_loss=True):
    W = params["W"]                 # (2*(C-1), F)
    mu_tilde = jnp.asarray(params["mu_tilde"], jnp.float32)   # (C, C)
    mu_K = params["mu_K"]           # (C, C)
    sigma_K = params["sigma_K"]     # ()
    C = mu_tilde.shape[0]
    B, N, _ = node_embs.shape
    P = n_particles

    # ---- get_S: q(pi) parameters (Pallas row-tiled matmul kernel) ----
    out = linear_softplus(node_embs, W)                 # (B, N, 2*(C-1))
    alpha_tilde = out[..., : C - 1]
    beta_tilde = out[..., C - 1:]

    # ---- Stick-breaking sample (reparameterized Beta sample; plain JAX RNG) ----
    sticks = jax.random.beta(sample_key, alpha_tilde, beta_tilde,
                             shape=(P, B, N, C - 1)).astype(jnp.float32)
    zeros1 = jnp.zeros((P, B, N, 1), jnp.float32)
    log_v = jnp.concatenate([jnp.log(sticks), zeros1], axis=-1)
    log_1mv = jnp.concatenate([zeros1, jnp.log(1.0 - sticks)], axis=-1)
    S = jnp.exp(log_v + jnp.cumsum(log_1mv, axis=-1))   # (P, B, N, C)

    # ---- Reconstruction loss (Pallas; only adj streamed, mask/pw built in-kernel)
    SK = jnp.einsum('pbnc,cd->pbnd', S, mu_tilde)       # hoisted tiny GEMM
    if pos_weight is None:
        pw_scalar = jnp.ones((B,), jnp.float32)
    else:
        pw_scalar = jnp.asarray(pos_weight, jnp.float32).reshape(B)
    rec_loss = rec_loss_sum(SK, S, jnp.asarray(adj, jnp.float32),
                            jnp.asarray(node_mask, jnp.float32),
                            pw_scalar)                  # (B, P)

    # ---- KL( Beta(a,b) || Beta(1, alpha_DP) )  (lgamma/digamma -> plain JAX) ----
    a_p, b_p = alpha_tilde, beta_tilde
    a_q = jnp.ones((C - 1,), jnp.float32)
    b_q = jnp.full((C - 1,), alpha_DP, jnp.float32)
    sum_p, sum_q = a_p + b_p, a_q + b_q
    lgamma = jax.scipy.special.gammaln
    digamma = jax.scipy.special.digamma
    kl = (lgamma(a_q) + lgamma(b_q) + lgamma(sum_p)
          - (lgamma(a_p) + lgamma(b_p) + lgamma(sum_q))
          + (a_p - a_q) * digamma(a_p)
          + (b_p - b_q) * digamma(b_p)
          + (sum_q - sum_p) * digamma(sum_p))                        # (B, N, C-1)
    kl_loss = eta * kl.sum(-1)                                       # (B, N)
    kl_loss = kl_loss * node_mask          # identical to reference when mask is all-ones
    kl_loss = kl_loss.sum(-1)                                        # (B,)

    # ---- K prior (tiny, plain JAX) ----
    K_prior_loss = (0.5 * (mu_tilde - mu_K) ** 2 / sigma_K).sum()

    if rescale_loss:
        Nn = node_mask.sum(-1)                                       # (B,)
        rec_loss = rec_loss / Nn[:, None]                            # (B, P)
        kl_loss = kl_loss / Nn
        K_prior_loss = K_prior_loss / Nn                             # (B,)

    loss_d = {
        "quality": rec_loss.mean(),
        "kl": eta * kl_loss.mean(),     # eta applied twice, as in the reference
        "K_prior": K_prior_loss.mean(),
    }
    return S[0], loss_d


# --------------------------------------------------------------------------- #
if __name__ == "__main__":
    B, N, F, C, P = 2, 16, 32, 8, 1
    alpha_DP, eta, k_init, mu_K_val, sigma_K_val = 10.0, 1.0, 1.0, 10.0, 1.0

    key = jax.random.PRNGKey(0)
    kx, ka, kw, ks = jax.random.split(key, 4)

    node_embs = jax.random.normal(kx, (B, N, F), jnp.float32)
    adj = jax.random.bernoulli(ka, 0.3, (B, N, N)).astype(jnp.float32)
    adj = jnp.maximum(adj, jnp.swapaxes(adj, 1, 2))                  # symmetric
    node_mask = jnp.concatenate(
        [jnp.ones((1, N), jnp.float32),
         jnp.concatenate([jnp.ones((1, 12), jnp.float32),
                          jnp.zeros((1, N - 12), jnp.float32)], axis=-1)],
        axis=0)                                                      # (B, N)
    # balance_links=True -> per-batch positive-edge up-weight scalar
    # (equivalent to the dense pos_weight = where(adj>0, pw_val, 1) construction).
    n_edges = adj.sum((-1, -2))
    pos_weight = (N * N - n_edges) / jnp.maximum(n_edges, 1.0)       # (B,)

    # Deterministic parameter init (shapes from BNPool.__init__)
    eye = jnp.eye(C, dtype=jnp.float32)
    params = {
        "W": 0.1 * jax.random.normal(kw, (2 * (C - 1), F), jnp.float32),
        "mu_tilde": k_init * eye - k_init * (1.0 - eye),
        "mu_K": mu_K_val * eye - mu_K_val * (1.0 - eye),
        "sigma_K": jnp.float32(sigma_K_val),
    }

    S, loss_d = bnpool_forward(params, node_embs, adj, node_mask, pos_weight, ks,
                               n_particles=P, alpha_DP=alpha_DP, eta=eta,
                               rescale_loss=True)
    (S, loss_d) = jax.block_until_ready((S, loss_d))

    assert S.shape == (B, N, C)
    assert bool(jnp.isfinite(S).all())
    assert all(bool(jnp.isfinite(v)) for v in loss_d.values())
    print("KERNEL_OK")
</pallas_src>

<mosaic_0001>
module attributes {stable_mosaic.version = 11 : i64} {
  func.func @_linear_softplus_kernel(%arg0: i32, %arg1: memref<32x32xf32, #tpu.memory_space<vmem>>, %arg2: memref<32x128xf32, #tpu.memory_space<vmem>>, %arg3: memref<32x128xf32, #tpu.memory_space<vmem>>) attributes {dimension_semantics = [#tpu.dimension_semantics<parallel>], iteration_bounds = array<i64: 1>, scalar_prefetch = 0 : i64, scratch_operands = 0 : i64, tpu.core_type = #tpu.core_type<tc>, window_params = [{transform_indices = @transform_0, window_bounds = array<i64: 32, 32>}, {pipeline_mode = #tpu.pipeline_mode<synchronous>, transform_indices = @transform_1, window_bounds = array<i64: 32, 128>}, {transform_indices = @transform_2, window_bounds = array<i64: 32, 128>}]} {
    %c0 = arith.constant 0 : index
    %c0_0 = arith.constant 0 : index
    %0 = vector.load %arg1[%c0, %c0_0] : memref<32x32xf32, #tpu.memory_space<vmem>>, vector<32x32xf32>
    %c0_1 = arith.constant 0 : index
    %c0_2 = arith.constant 0 : index
    %1 = vector.load %arg2[%c0_1, %c0_2] : memref<32x128xf32, #tpu.memory_space<vmem>>, vector<32x128xf32>
    %cst = arith.constant dense<0.000000e+00> : vector<32x128xf32>
    %2 = tpu.matmul %0, %1, %cst {dimension_numbers = #tpu.dot_dimension_numbers<[1], [0], [0], [1], [0, 0, 1, 1], [], []>} : vector<32x32xf32>, vector<32x128xf32>, vector<32x128xf32> -> vector<32x128xf32>
    %cst_3 = arith.constant 0.000000e+00 : f32
    %3 = vector.broadcast %cst_3 : f32 to vector<32x128xf32>
    %4 = arith.maximumf %2, %3 : vector<32x128xf32>
    %5 = math.absf %2 : vector<32x128xf32>
    %cst_4 = arith.constant 0.000000e+00 : f32
    %6 = vector.broadcast %cst_4 : f32 to vector<32x128xf32>
    %7 = arith.subf %6, %5 : vector<32x128xf32>
    %8 = math.exp %7 : vector<32x128xf32>
    %9 = math.log1p %8 : vector<32x128xf32>
    %10 = arith.addf %4, %9 : vector<32x128xf32>
    %cst_5 = arith.constant 1.000000e-03 : f32
    %cst_6 = arith.constant 1.000000e+03 : f32
    %11 = vector.broadcast %cst_5 : f32 to vector<32x128xf32>
    %12 = arith.maximumf %11, %10 : vector<32x128xf32>
    %13 = vector.broadcast %cst_6 : f32 to vector<32x128xf32>
    %14 = arith.minimumf %13, %12 : vector<32x128xf32>
    %c0_7 = arith.constant 0 : index
    %c0_8 = arith.constant 0 : index
    %15 = vector.load %arg3[%c0_7, %c0_8] : memref<32x128xf32, #tpu.memory_space<vmem>>, vector<32x128xf32>
    tpu.vector_store %arg3[%c0_7, %c0_8], %14 {strides = array<i32>} : memref<32x128xf32, #tpu.memory_space<vmem>>, vector<32x128xf32>,
    return
  }
  func.func @transform_0(%arg0: i32) -> (i32, i32) {
    %c0_i32 = arith.constant 0 : i32
    %c0_i32_0 = arith.constant 0 : i32
    return %arg0, %c0_i32 : i32, i32
  }
  func.func @transform_1(%arg0: i32) -> (i32, i32) {
    %c0_i32 = arith.constant 0 : i32
    %c0_i32_0 = arith.constant 0 : i32
    %c0_i32_1 = arith.constant 0 : i32
    return %c0_i32, %c0_i32_0 : i32, i32
  }
  func.func @transform_2(%arg0: i32) -> (i32, i32) {
    %c0_i32 = arith.constant 0 : i32
    %c0_i32_0 = arith.constant 0 : i32
    return %arg0, %c0_i32 : i32, i32
  }
}

</mosaic_0001>

<llo_original>
// kernel: tpu_custom_call.1
$region0: #{tpu_custom_call.1}
  #allocation0 [shape = 'u32[]', space=smem, size = 0x4, offset = 0x4, fixed_abs, tag = 'smem constant byte address 0x4 - core index']
  #allocation1 [shape = 'u32[144,128]{1,0:T(1,128)}', space=vmem, size = 0x12000, scoped, tag = 'internal scratch']
  %s0 = inlined_call_operand.hbm [shape: f32[32,32], index: 0, kind: input, shape index: {}]
  %s1 = inlined_call_operand.hbm [shape: f32[32,128], index: 1, kind: input, shape index: {}]
  %s2 = inlined_call_operand.hbm [shape: f32[32,128], index: 2, kind: output, shape index: {}]
  %s3 = sld [smem:[#allocation0]]
  $region26: #{tpu_custom_call.1} parent=0
    _
  %s5 = ssub.s32 1, %s3
  %s6 = scalar_select 0, %s5, %s3
  $region1: #{tpu_custom_call.1} parent=0
    #allocation2 [shape = 'u8[16384]{0}', space=vmem, size = 0x4000, scoped, tag = 'input window, operand 0, single buffered']
    #allocation3 [shape = 's32[1]{0}', space=sflag, size = 0x4, scoped, tag = 'scoped memory for tpu_custom_call.1']
    #allocation4 [shape = 's32[1]{0}', space=sflag, size = 0x4, scoped, tag = 'scoped memory for tpu_custom_call.1']
    #allocation5 [shape = 'u8[16384]{0}', space=vmem, size = 0x4000, scoped, tag = 'input window, operand 1, single buffered']
    #allocation6 [shape = 's32[1]{0}', space=sflag, size = 0x4, scoped, tag = 'scoped memory for tpu_custom_call.1']
    #allocation7 [shape = 'u8[16384]{0}', space=vmem, size = 0x4000, scoped, tag = 'output window, operand 0, single buffered']
    %7 = vsyncpa [#allocation3], 0
    %8 = vsyncpa [#allocation6], 0
    %9 = vsyncpa [#allocation4], 0
    // Predicated region
    $region2: #{tpu_custom_call.1} parent=1 // pred_check
      _
    $region3: #{tpu_custom_call.1} parent=1 // pred_check_branch
      %11 = sbr.rel (0) target = $region5
    $region4: #{tpu_custom_call.1} parent=1 // pred_region
      %s13 = ssub.s32 512, 512
      %14 = vsyncadd [#allocation3], %s13
      %s15 = sshll.u32 [#allocation2], 4
      %s16 = int_to_ptr.vmem [resolvable:$true] %s15
      %21 = dma.hbm_to_vmem [thread:$0]  %s0, 512, %s16, [#allocation3], 128, 128, 8
    $region5: #{tpu_custom_call.1} parent=1 // pred_fallthru
      _
    // Predicated region
    $region6: #{tpu_custom_call.1} parent=1 // pred_check
      _
    $region7: #{tpu_custom_call.1} parent=1 // pred_check_branch
      %23 = sbr.rel (0) target = $region9
    $region8: #{tpu_custom_call.1} parent=1 // pred_region
      %s25 = ssub.s32 512, 512
      %26 = vsyncadd [#allocation6], %s25
      %s27 = sshll.u32 [#allocation5], 4
      %s28 = int_to_ptr.vmem [resolvable:$true] %s27
      %33 = dma.hbm_to_vmem [thread:$0]  %s1, 512, %s28, [#allocation6], 128, 128, 8
    $region9: #{tpu_custom_call.1} parent=1 // pred_fallthru
      _
    // Predicated region
    $region10: #{tpu_custom_call.1} parent=1 // pred_check
      _
    $region11: #{tpu_custom_call.1} parent=1 // pred_check_branch
      %35 = sbr.rel (0) target = $region13
    $region12: #{tpu_custom_call.1} parent=1 // pred_region
      %36 = dma.done [#allocation3], 512
    $region13: #{tpu_custom_call.1} parent=1 // pred_fallthru
      _
    // Predicated region
    $region14: #{tpu_custom_call.1} parent=1 // pred_check
      _
    $region15: #{tpu_custom_call.1} parent=1 // pred_check_branch
      %38 = sbr.rel (0) target = $region17
    $region16: #{tpu_custom_call.1} parent=1 // pred_region
      %39 = dma.done [#allocation6], 512
    $region17: #{tpu_custom_call.1} parent=1 // pred_fallthru
      _
    %v40 = vld [vmem:[#allocation2] sm:$0xff]
    %v41 = vld [vmem:[#allocation2 + $0x8] sm:$0xff]
    %v42 = vld [vmem:[#allocation2 + $0x10] sm:$0xff]
    %v43 = vld [vmem:[#allocation2 + $0x18] sm:$0xff]
    %v44 = vld [vmem:[#allocation5] sm:$0xff]
    %v45 = vld [vmem:[#allocation5 + $0x8] sm:$0xff]
    %v46 = vld [vmem:[#allocation5 + $0x10] sm:$0xff]
    %v47 = vld [vmem:[#allocation5 + $0x18] sm:$0xff]
    %vm48 = vcmask 261120
    %v50 = vsel %vm48, %v40, 0
    %v53 = vsel %vm48, %v41, 0
    %v56 = vsel %vm48, %v42, 0
    %v59 = vsel %vm48, %v43, 0
    %61 = vmatprep.subr.mxu0 0.0
    %62 = vmatpush1.msra.mxu0 %v44
    %63 = vmatprep.subr.mxu0 0.0
    %64 = vmatpush1.msra.mxu0 %v45
    %65 = vmatprep.subr.mxu0 0.0
    %66 = vmatpush1.msra.mxu0 %v46
    %67 = vmatprep.subr.mxu0 0.0
    %68 = vmatpush1.msra.mxu0 %v47
    %69 = vmatprep.subr.mxu0 0.0
    %70 = vmatpush1.msra.mxu0 0.0
    %71 = vmatprep.subr.mxu0 0.0
    %72 = vmatpush1.msra.mxu0 0.0
    %73 = vmatprep.subr.mxu0 0.0
    %74 = vmatpush1.msra.mxu0 0.0
    %75 = vmatprep.subr.mxu0 0.0
    %76 = vmatpush1.msra.mxu0 0.0
    %77 = vmatprep.subr.mxu0 0.0
    %78 = vmatpush1.msra.mxu0 0.0
    %79 = vmatprep.subr.mxu0 0.0
    %80 = vmatpush1.msra.mxu0 0.0
    %81 = vmatprep.subr.mxu0 0.0
    %82 = vmatpush1.msra.mxu0 0.0
    %83 = vmatprep.subr.mxu0 0.0
    %84 = vmatpush1.msra.mxu0 0.0
    %85 = vmatprep.subr.mxu0 0.0
    %86 = vmatpush1.msra.mxu0 0.0
    %87 = vmatprep.subr.mxu0 0.0
    %88 = vmatpush1.msra.mxu0 0.0
    %89 = vmatprep.subr.mxu0 0.0
    %90 = vmatpush1.msra.mxu0 0.0
    %91 = vmatprep.subr.mxu0 0.0
    %92 = vmatpush1.msra.mxu0 0.0
    %93 = vmatprep.subr.mxu0 0.0
    %94 = vmatpush1.msra.mxu0 0.0
    %95 = vmatprep.subr.mxu0 0.0
    %96 = vmatpush1.msra.mxu0 0.0
    %97 = vmatprep.subr.mxu0 0.0
    %98 = vmatpush1.msra.mxu0 0.0
    %99 = vmatprep.subr.mxu0 0.0
    %100 = vmatpush1.msra.mxu0 0.0
    %101 = vmatprep.subr.mxu0 0.0
    %102 = vmatpush1.msra.mxu0 0.0
    %103 = vmatprep.subr.mxu0 0.0
    %104 = vmatpush1.msra.mxu0 0.0
    %105 = vmatprep.subr.mxu0 0.0
    %106 = vmatpush1.msra.mxu0 0.0
    %107 = vmatprep.subr.mxu0 0.0
    %108 = vmatpush1.msra.mxu0 0.0
    %109 = vmatprep.subr.mxu0 0.0
    %110 = vmatpush1.msra.mxu0 0.0
    %111 = vmatprep.subr.mxu0 0.0
    %112 = vmatpush1.msra.mxu0 0.0
    %113 = vmatprep.subr.mxu0 0.0
    %114 = vmatpush1.msra.mxu0 0.0
    %115 = vmatprep.subr.mxu0 0.0
    %116 = vmatpush1.msra.mxu0 0.0
    %117 = vmatprep.subr.mxu0 0.0
    %118 = vmatpush1.msra.mxu0 0.0
    %119 = vmatprep.subr.mxu0 0.0
    %120 = vmatpush1.msra.mxu0 0.0
    %121 = vmatprep.subr.mxu0 0.0
    %122 = vmatpush1.msra.mxu0 0.0
    %123 = vmatprep.subr.mxu0 0.0
    %124 = vmatpush1.msra.mxu0 0.0
    %125 = vmatprep.mubr.f32.mxu0 0.0
    %126 = vmatmul.mubr.f32.gmra.mrb[0].mxu0 %v50
    %v127 = vpop.f32.mrb[0].mxu0
    %v128 = vadd.f32 0.0, %v127
    %v129 = vpop.f32.mrb[0].mxu0
    %130 = vmatprep.mubr.f32.mxu0 0.0
    %131 = vmatmul.mubr.f32.gmra.mrb[0].mxu0 %v53
    %v132 = vpop.f32.mrb[0].mxu0
    %v133 = vadd.f32 0.0, %v132
    %v134 = vpop.f32.mrb[0].mxu0
    %135 = vmatprep.mubr.f32.mxu0 0.0
    %136 = vmatmul.mubr.f32.gmra.mrb[0].mxu0 %v56
    %v137 = vpop.f32.mrb[0].mxu0
    %v138 = vadd.f32 0.0, %v137
    %v139 = vpop.f32.mrb[0].mxu0
    %140 = vmatprep.mubr.f32.mxu0 0.0
    %141 = vmatmul.mubr.f32.gmra.mrb[0].mxu0 %v59
    %v142 = vpop.f32.mrb[0].mxu0
    %v143 = vadd.f32 0.0, %v142
    %v144 = vpop.f32.mrb[0].mxu0
    %145 = vdwg.mxu0
    %v146 = vmax.f32 %v128, 0.0
    %v147 = vmax.f32 %v133, 0.0
    %v148 = vmax.f32 %v138, 0.0
    %v149 = vmax.f32 %v143, 0.0
    %v150 = vand.u32 2147483647, %v128
    %v151 = vand.u32 2147483647, %v133
    %v152 = vand.u32 2147483647, %v138
    %v153 = vand.u32 2147483647, %v143
    %v154 = vsub.f32 0.0, %v150
    %v155 = vsub.f32 0.0, %v151
    %v156 = vsub.f32 0.0, %v152
    %v157 = vsub.f32 0.0, %v153
    %v158 = vmul.f32 %v154, 1.442695
    %v159 = vpow.pop %v158
    %v160 = vmul.f32 %v155, 1.442695
    %v161 = vpow.pop %v160
    %v162 = vmul.f32 %v156, 1.442695
    %v163 = vpow.pop %v162
    %v164 = vmul.f32 %v157, 1.442695
    %v165 = vpow.pop %v164
    %v166 = vadd.f32 %v159, 1.0
    %v167 = vlog2.pop %v166
    %v168 = vmul.f32 %v167, 0.6931472
    %v169 = vmul.f32 -0.5, %v159
    %v170 = vadd.f32 %v169, 1.0
    %v171 = vmul.f32 %v170, %v159
    %v172 = vand.u32 2147483647, %v159
    %vm173 = vcmp.lt.f32.partialorder %v172, 0.0004427343
    %v174 = vsel %vm173, %v171, %v168
    %v175 = vadd.f32 %v161, 1.0
    %v176 = vlog2.pop %v175
    %v177 = vmul.f32 %v176, 0.6931472
    %v178 = vmul.f32 -0.5, %v161
    %v179 = vadd.f32 %v178, 1.0
    %v180 = vmul.f32 %v179, %v161
    %v181 = vand.u32 2147483647, %v161
    %vm182 = vcmp.lt.f32.partialorder %v181, 0.0004427343
    %v183 = vsel %vm182, %v180, %v177
    %v184 = vadd.f32 %v163, 1.0
    %v185 = vlog2.pop %v184
    %v186 = vmul.f32 %v185, 0.6931472
    %v187 = vmul.f32 -0.5, %v163
    %v188 = vadd.f32 %v187, 1.0
    %v189 = vmul.f32 %v188, %v163
    %v190 = vand.u32 2147483647, %v163
    %vm191 = vcmp.lt.f32.partialorder %v190, 0.0004427343
    %v192 = vsel %vm191, %v189, %v186
    %v193 = vadd.f32 %v165, 1.0
    %v194 = vlog2.pop %v193
    %v195 = vmul.f32 %v194, 0.6931472
    %v196 = vmul.f32 -0.5, %v165
    %v197 = vadd.f32 %v196, 1.0
    %v198 = vmul.f32 %v197, %v165
    %v199 = vand.u32 2147483647, %v165
    %vm200 = vcmp.lt.f32.partialorder %v199, 0.0004427343
    %v201 = vsel %vm200, %v198, %v195
    %v202 = vadd.f32 %v146, %v174
    %v203 = vadd.f32 %v147, %v183
    %v204 = vadd.f32 %v148, %v192
    %v205 = vadd.f32 %v149, %v201
    %v206 = vmax.f32 %v202, 0.001
    %v207 = vmax.f32 %v203, 0.001
    %v208 = vmax.f32 %v204, 0.001
    %v209 = vmax.f32 %v205, 0.001
    %v210 = vmin.f32 %v206, 1000.0
    %v211 = vmin.f32 %v207, 1000.0
    %v212 = vmin.f32 %v208, 1000.0
    %v213 = vmin.f32 %v209, 1000.0
    %214 = vst [vmem:[#allocation7] sm:$0xff] %v210
    %215 = vst [vmem:[#allocation7 + $0x8] sm:$0xff] %v211
    %216 = vst [vmem:[#allocation7 + $0x10] sm:$0xff] %v212
    %217 = vst [vmem:[#allocation7 + $0x18] sm:$0xff] %v213
    // Predicated region
    $region18: #{tpu_custom_call.1} parent=1 // pred_check
      _
    $region19: #{tpu_custom_call.1} parent=1 // pred_check_branch
      %219 = sbr.rel (0) target = $region21
    $region20: #{tpu_custom_call.1} parent=1 // pred_region
      %s221 = ssub.s32 512, 512
      %222 = vsyncadd [#allocation4], %s221
      %s223 = sshll.u32 [#allocation7], 4
      %s224 = int_to_ptr.vmem [resolvable:$true] %s223
      %229 = dma.vmem_to_hbm [thread:$0]  %s224, 512, %s2, [#allocation4], 128, 128, 8
    $region21: #{tpu_custom_call.1} parent=1 // pred_fallthru
      _
    // Predicated region
    $region22: #{tpu_custom_call.1} parent=1 // pred_check
      _
    $region23: #{tpu_custom_call.1} parent=1 // pred_check_branch
      %231 = sbr.rel (0) target = $region25
    $region24: #{tpu_custom_call.1} parent=1 // pred_region
      %232 = dma.done [#allocation4], 512
    $region25: #{tpu_custom_call.1} parent=1 // pred_fallthru
      _
    %233 = vsyncpa [#allocation3], 1
    %234 = vsyncpa [#allocation6], 1
    %235 = vsyncpa [#allocation4], 1

</llo_original>
